<compile_context>
chip_gen: v7x
topology: tpu7x:2x2x1
jax: 0.10.0
libtpu: 0.0.40
codegen_flags: <defaults>
</compile_context>

<pallas_src>
import functools

import jax
import jax.numpy as jnp
import numpy as np
from jax.experimental import pallas as pl
from jax.experimental.pallas import tpu as pltpu


def _pick_row_block(total, target):
    """Largest divisor of `total` that is a multiple of 8 and <= target; else the largest
    divisor >= 8; else `total` itself (one big block). Never collapses toward 1."""
    best = None
    for t in range(min(total, target), 0, -1):
        if total % t == 0:
            if t % 8 == 0:
                return t
            if best is None:
                best = t
    if best is not None and best >= 8:
        return best
    return total


def _reflect_upsample_idx(padded_len, up_len, pad, up):
    """Source index (into the pre-upsample axis) for every reflection-padded,
    nearest-upsampled coordinate: mirror (no edge repeat), then // upsample."""
    i = np.arange(padded_len) - pad
    i = np.where(i < 0, -i, i)
    i = np.where(i >= up_len, 2 * up_len - 2 - i, i)
    return (i // up).astype(np.int32)


def _vmem_limit(block_bytes, headroom=4, floor=8 << 20, ceil=64 << 20):
    return int(max(floor, min(ceil, headroom * block_bytes)))


@functools.partial(jax.jit,
                   static_argnames=("kernel_size", "stride", "upsample", "eps", "channels_last"))
def upsample_conv_layer(x_nchw, params, *, kernel_size, stride, upsample=None, eps=1e-5,
                        channels_last=False):
    w = params["weight"]       # (Cout, Cin, K, K) -- PyTorch OIHW
    gamma = params["gamma"]    # (Cout,)
    beta = params["beta"]      # (Cout,)
    # params["bias"] is intentionally unused: the conv bias is a mathematical no-op under
    # training-mode BatchNorm (it only shifts the mean and cancels exactly).

    N, Cin, H, W = x_nchw.shape
    Cout = w.shape[0]
    K = kernel_size
    pad = K // 2
    up = upsample if upsample else 1

    Hu, Wu = H * up, W * up                    # after nearest upsample
    Hp, Wp = Hu + 2 * pad, Wu + 2 * pad        # after reflection pad
    Ho = (Hp - K) // stride + 1
    Wo = (Wp - K) // stride + 1

    TH = _pick_row_block(Ho, 256)              # output rows per grid step (multiple of 8)
    RB = Ho // TH                              # exact by construction
    TH_in = (TH - 1) * stride + K              # input rows per block (incl. K-1 halo)
    WCin = W * Cin                             # MXU contraction depth (raw rows!)
    WoC = Wo * Cout                            # lane-dense output dim

    src_h = _reflect_upsample_idx(Hp, Hu, pad, up)             # (Hp,)  values in [0, H)
    src_w = _reflect_upsample_idx(Wp, Wu, pad, up)             # (Wp,)  values in [0, W)

    # ---- H-direction row gather only (single gather, ~up x the input size) -------------
    blk_rows = np.arange(RB)[:, None] * (TH * stride) + np.arange(TH_in)[None, :]
    rows_src = src_h[blk_rows].reshape(-1)                     # (RB*TH_in,) in [0, H)
    xh = jnp.transpose(x_nchw, (0, 2, 3, 1)).astype(jnp.bfloat16).reshape(N, H, WCin)
    xg = jnp.take(xh, rows_src, axis=1).reshape(N, RB, TH_in, WCin)

    # ---- block-Toeplitz weight with the W-direction upsample+reflect map folded in -----
    # w_big[kh, wcol*Cin+ci, wo*Cout+co] = sum_{kw : src_w[wo*stride+kw]==wcol} w[co,ci,kh,kw]
    # (data-independent structure; in a real model this is built once per layer)
    kh_i, kw_i, ci_i, wo_i, co_i = np.meshgrid(
        np.arange(K), np.arange(K), np.arange(Cin), np.arange(Wo), np.arange(Cout),
        indexing="ij")
    t_rows = src_w[wo_i * stride + kw_i] * Cin + ci_i
    t_cols = wo_i * Cout + co_i
    wk = jnp.transpose(w, (2, 3, 1, 0)).astype(jnp.float32)    # (K, K, Cin, Cout)
    vals = wk[kh_i, kw_i, ci_i, co_i]                          # (K, K, Cin, Wo, Cout)
    w_big = (jnp.zeros((K, WCin, WoC), jnp.float32)
             .at[kh_i, t_rows, t_cols].add(vals)               # duplicates must ADD (upsample)
             ).astype(jnp.bfloat16)
    # TODO(synk): for v7x-scale channel counts add a Wo*Cout tile axis so the resident
    # weight block stays well under the 64 MiB VMEM.

    # ---- kernel 1: fused conv (K shifted matmuls) + per-block BN partial stats ---------
    def conv_stats_kernel(x_ref, w_ref, y_ref, sum_ref, ssd_ref, acc_ref):
        # x_ref: (TH_in, W*Cin) bf16 raw rows with halo; w_ref: (K, W*Cin, Wo*Cout) bf16.
        for kh in range(K):                            # unrolled, contraction depth W*Cin
            if stride == 1:
                xrows = x_ref[kh:kh + TH, :]
            else:
                xrows = x_ref[pl.ds(kh, TH, stride=stride), :]
            # TODO(synk): if the Mosaic dump shows the kh row-shift slice materializing a
            # VMEM copy, switch to a sublane pltpu.roll of the loaded block.
            p = jnp.dot(xrows, w_ref[kh], preferred_element_type=jnp.float32)
            if kh == 0:
                acc_ref[...] = p                       # f32 VMEM accumulator (no spills)
            else:
                acc_ref[...] += p
        y = acc_ref[...]                               # f32, pre-cast -> stats stay f32
        y_ref[...] = y.astype(y_ref.dtype)             # bf16 writeback
        s = jnp.sum(y, axis=0, keepdims=True)
        d = y - s * (1.0 / TH)                         # deviations from the block mean
        sum_ref[...] = s
        ssd_ref[...] = jnp.sum(d * d, axis=0, keepdims=True)

    k1_block_bytes = (2 * TH_in * WCin * 2 + 2 * K * WCin * WoC * 2
                      + 2 * (TH * WoC * 2 + 2 * WoC * 4) + TH * WoC * 4)
    y4, psum, pssd = pl.pallas_call(
        conv_stats_kernel,
        out_shape=(
            jax.ShapeDtypeStruct((N, RB, TH, WoC), jnp.bfloat16),
            jax.ShapeDtypeStruct((N, RB, 1, WoC), jnp.float32),
            jax.ShapeDtypeStruct((N, RB, 1, WoC), jnp.float32),
        ),
        grid=(N, RB),
        in_specs=[
            pl.BlockSpec((None, None, TH_in, WCin), lambda n, r: (n, r, 0, 0)),
            pl.BlockSpec((K, WCin, WoC), lambda n, r: (0, 0, 0)),       # resident weights
        ],
        out_specs=(
            pl.BlockSpec((None, None, TH, WoC), lambda n, r: (n, r, 0, 0)),
            pl.BlockSpec((None, None, 1, WoC), lambda n, r: (n, r, 0, 0)),
            pl.BlockSpec((None, None, 1, WoC), lambda n, r: (n, r, 0, 0)),
        ),
        scratch_shapes=[pltpu.VMEM((TH, WoC), jnp.float32)],
        compiler_params=pltpu.CompilerParams(
            dimension_semantics=("parallel", "parallel"),
            vmem_limit_bytes=_vmem_limit(k1_block_bytes),
        ),
    )(xg, w_big)

    # ---- training-mode BatchNorm2d stats: Chan's parallel-variance merge (exact) -------
    Mtot = N * Ho * Wo
    gsum = psum.reshape(N * RB, Wo, Cout).reshape(-1, Cout)    # groups of TH rows each
    gssd = pssd.reshape(N * RB, Wo, Cout).reshape(-1, Cout)
    gmean = gsum / TH
    mean = jnp.sum(gsum, axis=0) / Mtot
    m2 = jnp.sum(gssd, axis=0) + TH * jnp.sum((gmean - mean) ** 2, axis=0)
    var = m2 / Mtot                                            # >= 0 by construction
    scale = gamma.astype(jnp.float32) * jax.lax.rsqrt(var + eps)
    shift = beta.astype(jnp.float32) - mean * scale
    scale_row = jnp.tile(scale, Wo).reshape(1, WoC)            # match (wo, co) lane layout
    shift_row = jnp.tile(shift, Wo).reshape(1, WoC)

    # ---- kernel 2: fused BN affine + ReLU over a collapsed, large-tile row view --------
    rows_tot = N * Ho
    y2d = y4.reshape(rows_tot, WoC)                            # metadata-only reshape

    def bn_relu_kernel(y_ref, sc_ref, sh_ref, o_ref):
        y = y_ref[...].astype(jnp.float32)
        o_ref[...] = jnp.maximum(y * sc_ref[...] + sh_ref[...], 0.0)

    TR = _pick_row_block(rows_tot, 1024)
    k2_block_bytes = 2 * (TR * WoC * 2 + 2 * WoC * 4 + TR * WoC * 4)
    y_bn = pl.pallas_call(
        bn_relu_kernel,
        out_shape=jax.ShapeDtypeStruct((rows_tot, WoC), jnp.float32),
        grid=(rows_tot // TR,),
        in_specs=[
            pl.BlockSpec((TR, WoC), lambda i: (i, 0)),
            pl.BlockSpec((1, WoC), lambda i: (0, 0)),
            pl.BlockSpec((1, WoC), lambda i: (0, 0)),
        ],
        out_specs=pl.BlockSpec((TR, WoC), lambda i: (i, 0)),
        compiler_params=pltpu.CompilerParams(
            dimension_semantics=("parallel",),
            vmem_limit_bytes=_vmem_limit(k2_block_bytes),
        ),
    )(y2d, scale_row, shift_row)

    out_nhwc = y_bn.reshape(N, Ho, Wo, Cout)
    if channels_last:
        return out_nhwc                    # skip the extra full HBM read+write if allowed
    # NHWC -> NCHW kept as a separate lane-dense XLA pass (writing channels-major blocks
    # directly from kernel 2 would force masked partial stores with only Cout lanes).
    return out_nhwc.transpose(0, 3, 1, 2)


def init_params(key, in_channels, out_channels, kernel_size):
    """Deterministic init matching the shapes of the PyTorch module's parameters."""
    k1, k2 = jax.random.split(key)
    fan_in = in_channels * kernel_size * kernel_size
    bound = 1.0 / np.sqrt(fan_in)
    weight = jax.random.uniform(k1, (out_channels, in_channels, kernel_size, kernel_size),
                                jnp.float32, -bound, bound)
    bias = jax.random.uniform(k2, (out_channels,), jnp.float32, -bound, bound)
    gamma = jnp.ones((out_channels,), jnp.float32)   # BatchNorm2d default weight
    beta = jnp.zeros((out_channels,), jnp.float32)   # BatchNorm2d default bias
    return dict(weight=weight, bias=bias, gamma=gamma, beta=beta)


def reference(x_nchw, params, *, kernel_size, stride, upsample=None, eps=1e-5):
    """Pure-JAX f32 reference of the PyTorch forward (training-mode BN, WITH conv bias)."""
    w, b, gamma, beta = (params["weight"], params["bias"], params["gamma"], params["beta"])
    x = x_nchw
    if upsample:
        x = jnp.repeat(jnp.repeat(x, upsample, axis=2), upsample, axis=3)
    pad = kernel_size // 2
    x = jnp.pad(x, ((0, 0), (0, 0), (pad, pad), (pad, pad)), mode="reflect")
    y = jax.lax.conv_general_dilated(
        x, w, (stride, stride), "VALID",
        dimension_numbers=("NCHW", "OIHW", "NCHW"),
        precision=jax.lax.Precision.HIGHEST)
    y = y + b[None, :, None, None]
    mean = jnp.mean(y, axis=(0, 2, 3), keepdims=True)
    var = jnp.mean((y - mean) ** 2, axis=(0, 2, 3), keepdims=True)
    y = (y - mean) * jax.lax.rsqrt(var + eps)
    y = y * gamma[None, :, None, None] + beta[None, :, None, None]
    return jnp.maximum(y, 0.0)


if __name__ == "__main__":
    in_channels, out_channels, kernel_size, stride, upsample = 4, 8, 3, 1, 2

    key = jax.random.PRNGKey(0)
    kx, kp = jax.random.split(key)
    x = jax.random.normal(kx, (2, in_channels, 16, 16), jnp.float32)
    params = init_params(kp, in_channels, out_channels, kernel_size)

    out = upsample_conv_layer(x, params, kernel_size=kernel_size, stride=stride,
                              upsample=upsample)
    out = jax.block_until_ready(out)

    assert out.shape == (2, out_channels, 32, 32), out.shape

    ref = reference(x, params, kernel_size=kernel_size, stride=stride, upsample=upsample)
    # bf16 MXU operands + bf16 conv intermediate (f32 accumulation/statistics) vs. an
    # f32 HIGHEST-precision reference on BN-normalized outputs.
    np.testing.assert_allclose(np.asarray(out), np.asarray(ref), atol=4e-2, rtol=4e-2)

    print("KERNEL_OK")
</pallas_src>

<mosaic_0001>
module attributes {stable_mosaic.version = 11 : i64} {
  func.func private @main(%arg0: i32) attributes {dimension_semantics = [#tpu.dimension_semantics<core_parallel>], iteration_bounds = array<i64: 2>, tpu.core_type = #tpu.core_type<sc_scalar_subcore>, window_params = []} {
    return
  }
}

module attributes {stable_mosaic.version = 11 : i64} {
  func.func private @main(%arg0: i32) attributes {dimension_semantics = [#tpu.dimension_semantics<core_parallel>], iteration_bounds = array<i64: 2>, tpu.core_type = #tpu.core_type<sc_scalar_subcore>, window_params = []} {
    return
  }
}

module attributes {stable_mosaic.version = 11 : i64} {
  func.func @conv_stats_kernel(%arg0: i32, %arg1: i32, %arg2: memref<1x1x34x64xbf16, #tpu.memory_space<vmem>>, %arg3: memref<3x64x256xbf16, #tpu.memory_space<vmem>>, %arg4: memref<1x1x32x256xbf16, #tpu.memory_space<vmem>>, %arg5: memref<1x1x1x256xf32, #tpu.memory_space<vmem>>, %arg6: memref<1x1x1x256xf32, #tpu.memory_space<vmem>>, %arg7: memref<32x256xf32, #tpu.memory_space<vmem>>) attributes {dimension_semantics = [#tpu.dimension_semantics<parallel>, #tpu.dimension_semantics<parallel>], iteration_bounds = array<i64: 2, 1>, scalar_prefetch = 0 : i64, scratch_operands = 1 : i64, tpu.core_type = #tpu.core_type<tc>, window_params = [{transform_indices = @transform_0, window_bounds = array<i64: 1, 1, 34, 64>}, {pipeline_mode = #tpu.pipeline_mode<synchronous>, transform_indices = @transform_1, window_bounds = array<i64: 3, 64, 256>}, {transform_indices = @transform_2, window_bounds = array<i64: 1, 1, 32, 256>}, {transform_indices = @transform_3, window_bounds = array<i64: 1, 1, 1, 256>}, {transform_indices = @transform_4, window_bounds = array<i64: 1, 1, 1, 256>}]} {
    %c0 = arith.constant 0 : index
    %c0_0 = arith.constant 0 : index
    %c0_1 = arith.constant 0 : index
    %c0_2 = arith.constant 0 : index
    %0 = vector.load %arg2[%c0, %c0_0, %c0_1, %c0_2] : memref<1x1x34x64xbf16, #tpu.memory_space<vmem>>, vector<1x1x32x64xbf16>
    %1 = vector.shape_cast %0 : vector<1x1x32x64xbf16> to vector<32x64xbf16>
    %c0_3 = arith.constant 0 : index
    %c0_4 = arith.constant 0 : index
    %c0_5 = arith.constant 0 : index
    %2 = vector.load %arg3[%c0_3, %c0_4, %c0_5] : memref<3x64x256xbf16, #tpu.memory_space<vmem>>, vector<1x64x256xbf16>
    %3 = vector.shape_cast %2 : vector<1x64x256xbf16> to vector<64x256xbf16>
    %cst = arith.constant dense<0.000000e+00> : vector<32x256xf32>
    %4 = tpu.matmul %1, %3, %cst {dimension_numbers = #tpu.dot_dimension_numbers<[1], [0], [0], [1], [0, 0, 1, 1], [], []>} : vector<32x64xbf16>, vector<64x256xbf16>, vector<32x256xf32> -> vector<32x256xf32>
    %c0_6 = arith.constant 0 : index
    %c0_7 = arith.constant 0 : index
    %5 = vector.load %arg7[%c0_6, %c0_7] : memref<32x256xf32, #tpu.memory_space<vmem>>, vector<32x256xf32>
    tpu.vector_store %arg7[%c0_6, %c0_7], %4 {strides = array<i32>} : memref<32x256xf32, #tpu.memory_space<vmem>>, vector<32x256xf32>,
    %c0_8 = arith.constant 0 : index
    %c0_9 = arith.constant 0 : index
    %c1 = arith.constant 1 : index
    %c0_10 = arith.constant 0 : index
    %6 = vector.load %arg2[%c0_8, %c0_9, %c1, %c0_10] : memref<1x1x34x64xbf16, #tpu.memory_space<vmem>>, vector<1x1x32x64xbf16>
    %7 = vector.shape_cast %6 : vector<1x1x32x64xbf16> to vector<32x64xbf16>
    %c1_11 = arith.constant 1 : index
    %c0_12 = arith.constant 0 : index
    %c0_13 = arith.constant 0 : index
    %8 = vector.load %arg3[%c1_11, %c0_12, %c0_13] : memref<3x64x256xbf16, #tpu.memory_space<vmem>>, vector<1x64x256xbf16>
    %9 = vector.shape_cast %8 : vector<1x64x256xbf16> to vector<64x256xbf16>
    %cst_14 = arith.constant dense<0.000000e+00> : vector<32x256xf32>
    %10 = tpu.matmul %7, %9, %cst_14 {dimension_numbers = #tpu.dot_dimension_numbers<[1], [0], [0], [1], [0, 0, 1, 1], [], []>} : vector<32x64xbf16>, vector<64x256xbf16>, vector<32x256xf32> -> vector<32x256xf32>
    %c0_15 = arith.constant 0 : index
    %c0_16 = arith.constant 0 : index
    %11 = vector.load %arg7[%c0_15, %c0_16] : memref<32x256xf32, #tpu.memory_space<vmem>>, vector<32x256xf32>
    %12 = arith.addf %11, %10 : vector<32x256xf32>
    %c0_17 = arith.constant 0 : index
    %c0_18 = arith.constant 0 : index
    %13 = vector.load %arg7[%c0_17, %c0_18] : memref<32x256xf32, #tpu.memory_space<vmem>>, vector<32x256xf32>
    tpu.vector_store %arg7[%c0_17, %c0_18], %12 {strides = array<i32>} : memref<32x256xf32, #tpu.memory_space<vmem>>, vector<32x256xf32>,
    %c0_19 = arith.constant 0 : index
    %c0_20 = arith.constant 0 : index
    %c2 = arith.constant 2 : index
    %c0_21 = arith.constant 0 : index
    %14 = vector.load %arg2[%c0_19, %c0_20, %c2, %c0_21] : memref<1x1x34x64xbf16, #tpu.memory_space<vmem>>, vector<1x1x32x64xbf16>
    %15 = vector.shape_cast %14 : vector<1x1x32x64xbf16> to vector<32x64xbf16>
    %c2_22 = arith.constant 2 : index
    %c0_23 = arith.constant 0 : index
    %c0_24 = arith.constant 0 : index
    %16 = vector.load %arg3[%c2_22, %c0_23, %c0_24] : memref<3x64x256xbf16, #tpu.memory_space<vmem>>, vector<1x64x256xbf16>
    %17 = vector.shape_cast %16 : vector<1x64x256xbf16> to vector<64x256xbf16>
    %cst_25 = arith.constant dense<0.000000e+00> : vector<32x256xf32>
    %18 = tpu.matmul %15, %17, %cst_25 {dimension_numbers = #tpu.dot_dimension_numbers<[1], [0], [0], [1], [0, 0, 1, 1], [], []>} : vector<32x64xbf16>, vector<64x256xbf16>, vector<32x256xf32> -> vector<32x256xf32>
    %c0_26 = arith.constant 0 : index
    %c0_27 = arith.constant 0 : index
    %19 = vector.load %arg7[%c0_26, %c0_27] : memref<32x256xf32, #tpu.memory_space<vmem>>, vector<32x256xf32>
    %20 = arith.addf %19, %18 : vector<32x256xf32>
    %c0_28 = arith.constant 0 : index
    %c0_29 = arith.constant 0 : index
    %21 = vector.load %arg7[%c0_28, %c0_29] : memref<32x256xf32, #tpu.memory_space<vmem>>, vector<32x256xf32>
    tpu.vector_store %arg7[%c0_28, %c0_29], %20 {strides = array<i32>} : memref<32x256xf32, #tpu.memory_space<vmem>>, vector<32x256xf32>,
    %c0_30 = arith.constant 0 : index
    %c0_31 = arith.constant 0 : index
    %22 = vector.load %arg7[%c0_30, %c0_31] : memref<32x256xf32, #tpu.memory_space<vmem>>, vector<32x256xf32>
    %23 = arith.truncf %22 : vector<32x256xf32> to vector<32x256xbf16>
    %c0_32 = arith.constant 0 : index
    %c0_33 = arith.constant 0 : index
    %c0_34 = arith.constant 0 : index
    %c0_35 = arith.constant 0 : index
    %24 = vector.load %arg4[%c0_32, %c0_33, %c0_34, %c0_35] : memref<1x1x32x256xbf16, #tpu.memory_space<vmem>>, vector<1x1x32x256xbf16>
    %25 = vector.shape_cast %24 : vector<1x1x32x256xbf16> to vector<32x256xbf16>
    %26 = vector.shape_cast %23 : vector<32x256xbf16> to vector<1x1x32x256xbf16>
    tpu.vector_store %arg4[%c0_32, %c0_33, %c0_34, %c0_35], %26 {strides = array<i32>} : memref<1x1x32x256xbf16, #tpu.memory_space<vmem>>, vector<1x1x32x256xbf16>,
    %cst_36 = arith.constant dense<0.000000e+00> : vector<256xf32>
    %27 = vector.multi_reduction <add>, %22, %cst_36 [0] : vector<32x256xf32> to vector<256xf32>
    %28 = vector.shape_cast %27 : vector<256xf32> to vector<1x256xf32>
    %cst_37 = arith.constant 3.125000e-02 : f32
    %29 = vector.broadcast %cst_37 : f32 to vector<1x256xf32>
    %30 = arith.mulf %28, %29 : vector<1x256xf32>
    %31 = vector.broadcast %30 : vector<1x256xf32> to vector<32x256xf32>
    %32 = arith.subf %22, %31 : vector<32x256xf32>
    %c0_38 = arith.constant 0 : index
    %c0_39 = arith.constant 0 : index
    %c0_40 = arith.constant 0 : index
    %c0_41 = arith.constant 0 : index
    %33 = vector.load %arg5[%c0_38, %c0_39, %c0_40, %c0_41] : memref<1x1x1x256xf32, #tpu.memory_space<vmem>>, vector<1x1x1x256xf32>
    %34 = vector.shape_cast %33 : vector<1x1x1x256xf32> to vector<1x256xf32>
    %35 = vector.shape_cast %28 : vector<1x256xf32> to vector<1x1x1x256xf32>
    tpu.vector_store %arg5[%c0_38, %c0_39, %c0_40, %c0_41], %35 {strides = array<i32>} : memref<1x1x1x256xf32, #tpu.memory_space<vmem>>, vector<1x1x1x256xf32>,
    %36 = arith.mulf %32, %32 : vector<32x256xf32>
    %cst_42 = arith.constant dense<0.000000e+00> : vector<256xf32>
    %37 = vector.multi_reduction <add>, %36, %cst_42 [0] : vector<32x256xf32> to vector<256xf32>
    %38 = vector.shape_cast %37 : vector<256xf32> to vector<1x256xf32>
    %c0_43 = arith.constant 0 : index
    %c0_44 = arith.constant 0 : index
    %c0_45 = arith.constant 0 : index
    %c0_46 = arith.constant 0 : index
    %39 = vector.load %arg6[%c0_43, %c0_44, %c0_45, %c0_46] : memref<1x1x1x256xf32, #tpu.memory_space<vmem>>, vector<1x1x1x256xf32>
    %40 = vector.shape_cast %39 : vector<1x1x1x256xf32> to vector<1x256xf32>
    %41 = vector.shape_cast %38 : vector<1x256xf32> to vector<1x1x1x256xf32>
    tpu.vector_store %arg6[%c0_43, %c0_44, %c0_45, %c0_46], %41 {strides = array<i32>} : memref<1x1x1x256xf32, #tpu.memory_space<vmem>>, vector<1x1x1x256xf32>,
    return
  }
  func.func @transform_0(%arg0: i32, %arg1: i32) -> (i32, i32, i32, i32) {
    %c0_i32 = arith.constant 0 : i32
    %c0_i32_0 = arith.constant 0 : i32
    %c0_i32_1 = arith.constant 0 : i32
    return %arg0, %arg1, %c0_i32, %c0_i32_0 : i32, i32, i32, i32
  }
  func.func @transform_1(%arg0: i32, %arg1: i32) -> (i32, i32, i32) {
    %c0_i32 = arith.constant 0 : i32
    %c0_i32_0 = arith.constant 0 : i32
    %c0_i32_1 = arith.constant 0 : i32
    %c0_i32_2 = arith.constant 0 : i32
    return %c0_i32, %c0_i32_0, %c0_i32_1 : i32, i32, i32
  }
  func.func @transform_2(%arg0: i32, %arg1: i32) -> (i32, i32, i32, i32) {
    %c0_i32 = arith.constant 0 : i32
    %c0_i32_0 = arith.constant 0 : i32
    %c0_i32_1 = arith.constant 0 : i32
    return %arg0, %arg1, %c0_i32, %c0_i32_0 : i32, i32, i32, i32
  }
  func.func @transform_3(%arg0: i32, %arg1: i32) -> (i32, i32, i32, i32) {
    %c0_i32 = arith.constant 0 : i32
    %c0_i32_0 = arith.constant 0 : i32
    %c0_i32_1 = arith.constant 0 : i32
    return %arg0, %arg1, %c0_i32, %c0_i32_0 : i32, i32, i32, i32
  }
  func.func @transform_4(%arg0: i32, %arg1: i32) -> (i32, i32, i32, i32) {
    %c0_i32 = arith.constant 0 : i32
    %c0_i32_0 = arith.constant 0 : i32
    %c0_i32_1 = arith.constant 0 : i32
    return %arg0, %arg1, %c0_i32, %c0_i32_0 : i32, i32, i32, i32
  }
}

module attributes {stable_mosaic.version = 11 : i64} {
  func.func @bn_relu_kernel(%arg0: i32, %arg1: memref<64x256xbf16, #tpu.memory_space<vmem>>, %arg2: memref<1x256xf32, #tpu.memory_space<vmem>>, %arg3: memref<1x256xf32, #tpu.memory_space<vmem>>, %arg4: memref<64x256xf32, #tpu.memory_space<vmem>>) attributes {dimension_semantics = [#tpu.dimension_semantics<parallel>], iteration_bounds = array<i64: 1>, scalar_prefetch = 0 : i64, scratch_operands = 0 : i64, tpu.core_type = #tpu.core_type<tc>, window_params = [{transform_indices = @transform_0, window_bounds = array<i64: 64, 256>}, {pipeline_mode = #tpu.pipeline_mode<synchronous>, transform_indices = @transform_1, window_bounds = array<i64: 1, 256>}, {pipeline_mode = #tpu.pipeline_mode<synchronous>, transform_indices = @transform_2, window_bounds = array<i64: 1, 256>}, {transform_indices = @transform_3, window_bounds = array<i64: 64, 256>}]} {
    %c0 = arith.constant 0 : index
    %c0_0 = arith.constant 0 : index
    %0 = vector.load %arg1[%c0, %c0_0] : memref<64x256xbf16, #tpu.memory_space<vmem>>, vector<64x256xbf16>
    %1 = arith.extf %0 : vector<64x256xbf16> to vector<64x256xf32>
    %c0_1 = arith.constant 0 : index
    %c0_2 = arith.constant 0 : index
    %2 = vector.load %arg2[%c0_1, %c0_2] : memref<1x256xf32, #tpu.memory_space<vmem>>, vector<1x256xf32>
    %3 = vector.broadcast %2 : vector<1x256xf32> to vector<64x256xf32>
    %4 = arith.mulf %1, %3 : vector<64x256xf32>
    %c0_3 = arith.constant 0 : index
    %c0_4 = arith.constant 0 : index
    %5 = vector.load %arg3[%c0_3, %c0_4] : memref<1x256xf32, #tpu.memory_space<vmem>>, vector<1x256xf32>
    %6 = vector.broadcast %5 : vector<1x256xf32> to vector<64x256xf32>
    %7 = arith.addf %4, %6 : vector<64x256xf32>
    %cst = arith.constant 0.000000e+00 : f32
    %8 = vector.broadcast %cst : f32 to vector<64x256xf32>
    %9 = arith.maximumf %7, %8 : vector<64x256xf32>
    %c0_5 = arith.constant 0 : index
    %c0_6 = arith.constant 0 : index
    %10 = vector.load %arg4[%c0_5, %c0_6] : memref<64x256xf32, #tpu.memory_space<vmem>>, vector<64x256xf32>
    tpu.vector_store %arg4[%c0_5, %c0_6], %9 {strides = array<i32>} : memref<64x256xf32, #tpu.memory_space<vmem>>, vector<64x256xf32>,
    return
  }
  func.func @transform_0(%arg0: i32) -> (i32, i32) {
    %c0_i32 = arith.constant 0 : i32
    %c0_i32_0 = arith.constant 0 : i32
    return %arg0, %c0_i32 : i32, i32
  }
  func.func @transform_1(%arg0: i32) -> (i32, i32) {
    %c0_i32 = arith.constant 0 : i32
    %c0_i32_0 = arith.constant 0 : i32
    %c0_i32_1 = arith.constant 0 : i32
    return %c0_i32, %c0_i32_0 : i32, i32
  }
  func.func @transform_2(%arg0: i32) -> (i32, i32) {
    %c0_i32 = arith.constant 0 : i32
    %c0_i32_0 = arith.constant 0 : i32
    %c0_i32_1 = arith.constant 0 : i32
    return %c0_i32, %c0_i32_0 : i32, i32
  }
  func.func @transform_3(%arg0: i32) -> (i32, i32) {
    %c0_i32 = arith.constant 0 : i32
    %c0_i32_0 = arith.constant 0 : i32
    return %arg0, %c0_i32 : i32, i32
  }
}

</mosaic_0001>

<llo_original>
// kernel: tile.18
$region0: #{tile.18}
  #allocation0 [shape = 's32[1]{0}', space=sflag, size = 0x4, scoped, tag = 'scoped memory for tile.18']
  %s0 = inlined_call_operand.vmem [shape: f32[8], index: 0, kind: input, shape index: {}]
  %s1 = inlined_call_operand.vmem [shape: f32[32,8], index: 1, kind: output, shape index: {}]
  // Predicated region
  $region2: #{tile.18} parent=0 // pred_check
    _
  $region3: #{tile.18} parent=0 // pred_check_branch
    %3 = sbr.rel (0) target = $region5
  $region4: #{tile.18} parent=0 // pred_region
    _
  $region5: #{tile.18} parent=0 // pred_fallthru
    _
  %v4 = vld [vmem:[%s0] ss:$0 sm:$0xff]
  %5 = vst [vmem:[%s1] sm:$0xff] %v4
  %s6 = scalar_lea.vmem %s1, 8
  %7 = vst [vmem:[%s6] sm:$0xff] %v4
  %s8 = scalar_lea.vmem %s1, 16
  %9 = vst [vmem:[%s8] sm:$0xff] %v4
  %s10 = scalar_lea.vmem %s1, 24
  %11 = vst [vmem:[%s10] sm:$0xff] %v4

// kernel: tile.19
$region0: #{tile.19}
  %s0 = inlined_call_operand.vmem [shape: f32[32,8], index: 0, kind: input, shape index: {}]
  %s1 = inlined_call_operand.vmem [shape: f32[1,256], index: 1, kind: output, shape index: {}]
  $region1: #{tile.19} parent=0
    #allocation0 [shape = 'u8[8192]{0}', space=vmem, size = 0x2000, scoped, tag = 'scoped mem for output reshape']
    %s2 = smov 3
    %v3 = vld [vmem:[%s0] ss:$16 sm:%s2]
    %vm4 = vcmask 64512
    %5 = vst.msk [vmem:[#allocation0] ss:$8 sm:$0x3] %vm4, %v3
    %s6 = scalar_lea.vmem %s0, 15
    %s7 = smov 3
    %v8 = vld [vmem:[%s6] ss:$16 sm:%s7]
    %9 = vrot.lane.b32.xlu0 %v8, 120
    %v10 = vpop.permute.xlu0 %9
    %vm11 = vcmask 1048512
    %12 = vst.msk [vmem:[#allocation0] ss:$8 sm:$0x3] %vm11, %v10
    %s13 = scalar_lea.vmem %s0, 14
    %s14 = smov 3
    %v15 = vld [vmem:[%s13] ss:$16 sm:%s14]
    %16 = vrot.lane.b32.xlu0 %v15, 112
    %v17 = vpop.permute.xlu0 %16
    %vm18 = vcmask 982912
    %19 = vst.msk [vmem:[#allocation0] ss:$8 sm:$0x3] %vm18, %v17
    %s20 = scalar_lea.vmem %s0, 13
    %s21 = smov 3
    %v22 = vld [vmem:[%s20] ss:$16 sm:%s21]
    %23 = vrot.lane.b32.xlu0 %v22, 104
    %v24 = vpop.permute.xlu0 %23
    %vm25 = vcmask 917312
    %26 = vst.msk [vmem:[#allocation0] ss:$8 sm:$0x3] %vm25, %v24
    %s27 = scalar_lea.vmem %s0, 12
    %s28 = smov 3
    %v29 = vld [vmem:[%s27] ss:$16 sm:%s28]
    %30 = vrot.lane.b32.xlu0 %v29, 96
    %v31 = vpop.permute.xlu0 %30
    %vm32 = vcmask 851712
    %33 = vst.msk [vmem:[#allocation0] ss:$8 sm:$0x3] %vm32, %v31
    %s34 = scalar_lea.vmem %s0, 11
    %s35 = smov 3
    %v36 = vld [vmem:[%s34] ss:$16 sm:%s35]
    %37 = vrot.lane.b32.xlu0 %v36, 88
    %v38 = vpop.permute.xlu0 %37
    %vm39 = vcmask 786112
    %40 = vst.msk [vmem:[#allocation0] ss:$8 sm:$0x3] %vm39, %v38
    %s41 = scalar_lea.vmem %s0, 10
    %s42 = smov 3
    %v43 = vld [vmem:[%s41] ss:$16 sm:%s42]
    %44 = vrot.lane.b32.xlu0 %v43, 80
    %v45 = vpop.permute.xlu0 %44
    %vm46 = vcmask 720512
    %47 = vst.msk [vmem:[#allocation0] ss:$8 sm:$0x3] %vm46, %v45
    %s48 = scalar_lea.vmem %s0, 9
    %s49 = smov 3
    %v50 = vld [vmem:[%s48] ss:$16 sm:%s49]
    %51 = vrot.lane.b32.xlu0 %v50, 72
    %v52 = vpop.permute.xlu0 %51
    %vm53 = vcmask 654912
    %54 = vst.msk [vmem:[#allocation0] ss:$8 sm:$0x3] %vm53, %v52
    %s55 = scalar_lea.vmem %s0, 8
    %s56 = smov 3
    %v57 = vld [vmem:[%s55] ss:$16 sm:%s56]
    %58 = vrot.lane.b32.xlu0 %v57, 64
    %v59 = vpop.permute.xlu0 %58
    %vm60 = vcmask 589312
    %61 = vst.msk [vmem:[#allocation0] ss:$8 sm:$0x3] %vm60, %v59
    %s62 = scalar_lea.vmem %s0, 7
    %s63 = smov 3
    %v64 = vld [vmem:[%s62] ss:$16 sm:%s63]
    %65 = vrot.lane.b32.xlu0 %v64, 56
    %v66 = vpop.permute.xlu0 %65
    %vm67 = vcmask 523712
    %68 = vst.msk [vmem:[#allocation0] ss:$8 sm:$0x3] %vm67, %v66
    %s69 = scalar_lea.vmem %s0, 6
    %s70 = smov 3
    %v71 = vld [vmem:[%s69] ss:$16 sm:%s70]
    %72 = vrot.lane.b32.xlu0 %v71, 48
    %v73 = vpop.permute.xlu0 %72
    %vm74 = vcmask 458112
    %75 = vst.msk [vmem:[#allocation0] ss:$8 sm:$0x3] %vm74, %v73
    %s76 = scalar_lea.vmem %s0, 5
    %s77 = smov 3
    %v78 = vld [vmem:[%s76] ss:$16 sm:%s77]
    %79 = vrot.lane.b32.xlu0 %v78, 40
    %v80 = vpop.permute.xlu0 %79
    %vm81 = vcmask 392512
    %82 = vst.msk [vmem:[#allocation0] ss:$8 sm:$0x3] %vm81, %v80
    %s83 = scalar_lea.vmem %s0, 4
    %s84 = smov 3
    %v85 = vld [vmem:[%s83] ss:$16 sm:%s84]
    %86 = vrot.lane.b32.xlu0 %v85, 32
    %v87 = vpop.permute.xlu0 %86
    %vm88 = vcmask 326912
    %89 = vst.msk [vmem:[#allocation0] ss:$8 sm:$0x3] %vm88, %v87
    %s90 = scalar_lea.vmem %s0, 3
    %s91 = smov 3
    %v92 = vld [vmem:[%s90] ss:$16 sm:%s91]
    %93 = vrot.lane.b32.xlu0 %v92, 24
    %v94 = vpop.permute.xlu0 %93
    %vm95 = vcmask 261312
    %96 = vst.msk [vmem:[#allocation0] ss:$8 sm:$0x3] %vm95, %v94
    %s97 = scalar_lea.vmem %s0, 2
    %s98 = smov 3
    %v99 = vld [vmem:[%s97] ss:$16 sm:%s98]
    %100 = vrot.lane.b32.xlu0 %v99, 16
    %v101 = vpop.permute.xlu0 %100
    %vm102 = vcmask 195712
    %103 = vst.msk [vmem:[#allocation0] ss:$8 sm:$0x3] %vm102, %v101
    %s104 = scalar_lea.vmem %s0, 1
    %s105 = smov 3
    %v106 = vld [vmem:[%s104] ss:$16 sm:%s105]
    %107 = vrot.lane.b32.xlu0 %v106, 8
    %v108 = vpop.permute.xlu0 %107
    %vm109 = vcmask 130112
    %110 = vst.msk [vmem:[#allocation0] ss:$8 sm:$0x3] %vm109, %v108
    %s112 = sshllo.u32 0, 1
    %v114 = vld [vmem:[#allocation0] sm:%s112]
    %s115 = sshllo.u32 0, 1
    %116 = vst [vmem:[%s1] sm:%s115] %v114
    %s117 = scalar_lea.vmem [#allocation0], 8
    %v118 = vld [vmem:[%s117] sm:%s112]
    %s119 = sshllo.u32 0, 1
    %s120 = scalar_lea.vmem %s1, 1
    %121 = vst [vmem:[%s120] sm:%s119] %v118

// kernel: upsample_conv_layer.2
$region0: #{upsample_conv_layer.2}
  #allocation0 [shape = 'u32[]', space=smem, size = 0x4, offset = 0x4, fixed_abs, tag = 'smem constant byte address 0x4 - core index']
  #allocation1 [shape = 'u32[144,128]{1,0:T(1,128)}', space=vmem, size = 0x12000, scoped, tag = 'internal scratch']
  #allocation2 [shape = 'f32[32,256]{1,0:T(8,128)}', space=vmem, size = 0x8000, scoped, tag = 'scratch operand']
  %s0 = inlined_call_operand.vmem [shape: bf16[2,1,34,64], index: 0, kind: input, shape index: {}]
  %s1 = inlined_call_operand.vmem [shape: bf16[3,64,256], index: 1, kind: input, shape index: {}]
  %s2 = inlined_call_operand.vmem [shape: bf16[2,1,32,256], index: 2, kind: output, shape index: {0}]
  %s3 = inlined_call_operand.vmem [shape: f32[2,1,1,256], index: 3, kind: output, shape index: {1}]
  %s4 = inlined_call_operand.vmem [shape: f32[2,1,1,256], index: 4, kind: output, shape index: {2}]
  %5 = xla_tuple %s2, %s3, %s4
  %s6 = sld [smem:[#allocation0]]
  $region57: #{upsample_conv_layer.2} parent=0
    _
  %s8 = ssub.s32 1, %s6
  %s9 = scalar_select 0, %s8, %s6
  loop: start=0, step=1, limit=4
  $region2: #{upsample_conv_layer.2} parent=0 // loop_pre_header
    _
  $region3: #{upsample_conv_layer.2} parent=0 // loop_header
    %s11 = sphi 0, %s15
    %p12 = scmp.ge.s32.totalorder %s11, 4
    %s18 = sphi 0, %s30
    %s19 = sphi 0, %s26
    %s20 = sphi 0, %s18
    %s21 = sphi 0, %s19
    %s22 = sphi 0, %s20
    %s23 = sphi 0, %s21
    %s35 = sphi 0, %s37
    %s38 = sphi 0, %s35
    %s39 = sphi 0, %s38
    %s55 = sphi 0, %s39
    %s59 = sphi 0, %s59
    %s61 = sphi 0, %s59
    %s62 = sphi 0, %s61
    %s76 = sphi 0, %s62
    %s84 = sphi 0, %s86
    %s87 = sphi 0, %s84
    %s88 = sphi 0, %s87
    %s104 = sphi 0, %s88
    %s112 = sphi 0, %s114
    %s115 = sphi 0, %s112
    %s116 = sphi 0, %s115
    %s132 = sphi 0, %s116
    %s140 = sphi 0, %s142
    %s143 = sphi 0, %s140
    %s144 = sphi 0, %s143
    %s160 = sphi 0, %s144
  $region4: #{upsample_conv_layer.2} parent=0 // loop_header_branch
    %14 = sbr.rel (%p12) target = $region8
  $region5: #{upsample_conv_layer.2} parent=0 // loop_body
    %s16 = ssub.s32 %s11, 1
    %s17 = ssub.s32 %s11, 2
    %s24 = sadd.s32 1, %s19
    %p25 = scmp.ge.s32.totalorder %s24, 1
    %s26 = scalar_select %p25, 0, %s24
    %s27 = sadd.s32 1, %s18
    %s28 = scalar_select %p25, %s27, %s18
    %p29 = scmp.ge.s32.totalorder %s28, 2
    %s30 = scalar_select %p29, 0, %s28
    %s31 = ssub.s32 %s18, %s30
    %s32 = ssub.s32 %s19, %s26
    %s33 = sor.u32 %s31, %s32
    %p34 = scmp.eq.s32.totalorder %s33, 0
    %s36 = sadd.s32 %s35, 1
    %s37 = scalar_select %p34, %s35, %s36
    %p40 = pneg %p34
    %p41 = scmp.eq.s32.totalorder %s11, 1
    %p42 = por %p40, %p41
    %p43 = scmp.ne.s32.totalorder %s35, %s38
    %p44 = scmp.eq.s32.totalorder %s11, 0
    %p45 = por %p43, %p44
    %p46 = scmp.ne.s32.totalorder %s35, %s38
    %p47 = scmp.eq.s32.totalorder %s16, 1
    %p48 = por %p46, %p47
    %p49 = scmp.ne.s32.totalorder %s38, %s39
    %p50 = scmp.eq.s32.totalorder %s16, 0
    %p51 = por %p49, %p50
    %p52 = scmp.ne.s32.totalorder %s38, %s39
    %p53 = scmp.eq.s32.totalorder %s17, 1
    %p54 = por %p52, %p53
    %p56 = scmp.ne.s32.totalorder %s39, %s55
    %p57 = scmp.eq.s32.totalorder %s17, 0
    %p58 = por %p56, %p57
    %s60 = sadd.s32 %s59, 1
    %p63 = scmp.eq.s32.totalorder %s11, 1
    %p64 = scmp.ne.s32.totalorder %s59, %s61
    %p65 = scmp.eq.s32.totalorder %s11, 0
    %p66 = por %p64, %p65
    %p67 = scmp.ne.s32.totalorder %s59, %s61
    %p68 = scmp.eq.s32.totalorder %s16, 1
    %p69 = por %p67, %p68
    %p70 = scmp.ne.s32.totalorder %s61, %s62
    %p71 = scmp.eq.s32.totalorder %s16, 0
    %p72 = por %p70, %p71
    %p73 = scmp.ne.s32.totalorder %s61, %s62
    %p74 = scmp.eq.s32.totalorder %s17, 1
    %p75 = por %p73, %p74
    %p77 = scmp.ne.s32.totalorder %s62, %s76
    %p78 = scmp.eq.s32.totalorder %s17, 0
    %p79 = por %p77, %p78
    %s80 = ssub.s32 %s18, %s30
    %s81 = ssub.s32 %s19, %s26
    %s82 = sor.u32 %s80, %s81
    %p83 = scmp.eq.s32.totalorder %s82, 0
    %s85 = sadd.s32 %s84, 1
    %s86 = scalar_select %p83, %s84, %s85
    %p89 = pneg %p83
    %p90 = scmp.eq.s32.totalorder %s11, 1
    %p91 = por %p89, %p90
    %p92 = scmp.ne.s32.totalorder %s84, %s87
    %p93 = scmp.eq.s32.totalorder %s11, 0
    %p94 = por %p92, %p93
    %p95 = scmp.ne.s32.totalorder %s84, %s87
    %p96 = scmp.eq.s32.totalorder %s16, 1
    %p97 = por %p95, %p96
    %p98 = scmp.ne.s32.totalorder %s87, %s88
    %p99 = scmp.eq.s32.totalorder %s16, 0
    %p100 = por %p98, %p99
    %p101 = scmp.ne.s32.totalorder %s87, %s88
    %p102 = scmp.eq.s32.totalorder %s17, 1
    %p103 = por %p101, %p102
    %p105 = scmp.ne.s32.totalorder %s88, %s104
    %p106 = scmp.eq.s32.totalorder %s17, 0
    %p107 = por %p105, %p106
    %s108 = ssub.s32 %s18, %s30
    %s109 = ssub.s32 %s19, %s26
    %s110 = sor.u32 %s108, %s109
    %p111 = scmp.eq.s32.totalorder %s110, 0
    %s113 = sadd.s32 %s112, 1
    %s114 = scalar_select %p111, %s112, %s113
    %p117 = pneg %p111
    %p118 = scmp.eq.s32.totalorder %s11, 1
    %p119 = por %p117, %p118
    %p120 = scmp.ne.s32.totalorder %s112, %s115
    %p121 = scmp.eq.s32.totalorder %s11, 0
    %p122 = por %p120, %p121
    %p123 = scmp.ne.s32.totalorder %s112, %s115
    %p124 = scmp.eq.s32.totalorder %s16, 1
    %p125 = por %p123, %p124
    %p126 = scmp.ne.s32.totalorder %s115, %s116
    %p127 = scmp.eq.s32.totalorder %s16, 0
    %p128 = por %p126, %p127
    %p129 = scmp.ne.s32.totalorder %s115, %s116
    %p130 = scmp.eq.s32.totalorder %s17, 1
    %p131 = por %p129, %p130
    %p133 = scmp.ne.s32.totalorder %s116, %s132
    %p134 = scmp.eq.s32.totalorder %s17, 0
    %p135 = por %p133, %p134
    %s136 = ssub.s32 %s18, %s30
    %s137 = ssub.s32 %s19, %s26
    %s138 = sor.u32 %s136, %s137
    %p139 = scmp.eq.s32.totalorder %s138, 0
    %s141 = sadd.s32 %s140, 1
    %s142 = scalar_select %p139, %s140, %s141
    %p145 = pneg %p139
    %p146 = scmp.eq.s32.totalorder %s11, 1
    %p147 = por %p145, %p146
    %p148 = scmp.ne.s32.totalorder %s140, %s143
    %p149 = scmp.eq.s32.totalorder %s11, 0
    %p150 = por %p148, %p149
    %p151 = scmp.ne.s32.totalorder %s140, %s143
    %p152 = scmp.eq.s32.totalorder %s16, 1
    %p153 = por %p151, %p152
    %p154 = scmp.ne.s32.totalorder %s143, %s144
    %p155 = scmp.eq.s32.totalorder %s16, 0
    %p156 = por %p154, %p155
    %p157 = scmp.ne.s32.totalorder %s143, %s144
    %p158 = scmp.eq.s32.totalorder %s17, 1
    %p159 = por %p157, %p158
    %p161 = scmp.ne.s32.totalorder %s144, %s160
    %p162 = scmp.eq.s32.totalorder %s17, 0
    %p163 = por %p161, %p162
    %p164 = scmp.le.s32.totalorder 1, %s11
    %p165 = scmp.lt.s32.totalorder %s11, 3
    %p166 = pnand %p164, %p165
    %p167 = pneg %p166
    // Predicated region
    $region9: #{upsample_conv_layer.2} parent=5 // pred_check
      _
    $region10: #{upsample_conv_layer.2} parent=5 // pred_check_branch
      %169 = sbr.rel (%p166) target = $region12
    $region11: #{upsample_conv_layer.2} parent=5 // pred_region
      %s170 = ssub.s32 %s11, 1
      // Predicated region
      $region13: #{upsample_conv_layer.2} parent=11 // pred_check
        %p171 = pneg %p72
      $region14: #{upsample_conv_layer.2} parent=11 // pred_check_branch
        %173 = sbr.rel (%p171) target = $region16
      $region15: #{upsample_conv_layer.2} parent=11 // pred_region
        _
      $region16: #{upsample_conv_layer.2} parent=11 // pred_fallthru
        _
    $region12: #{upsample_conv_layer.2} parent=5 // pred_fallthru
      _
    %p174 = scmp.lt.s32.totalorder %s11, 2
    // Predicated region
    $region17: #{upsample_conv_layer.2} parent=5 // pred_check
      %p175 = pneg %p174
    $region18: #{upsample_conv_layer.2} parent=5 // pred_check_branch
      %177 = sbr.rel (%p175) target = $region20
    $region19: #{upsample_conv_layer.2} parent=5 // pred_region
      // Predicated region
      $region21: #{upsample_conv_layer.2} parent=19 // pred_check
        %p178 = pneg %p45
      $region22: #{upsample_conv_layer.2} parent=19 // pred_check_branch
        %180 = sbr.rel (%p178) target = $region24
      $region23: #{upsample_conv_layer.2} parent=19 // pred_region
        %p181 = scmp.lt.s32.totalorder %s18, 1
        %s182 = scalar_select %p181, %s18, 1
        %p183 = scmp.lt.s32.totalorder %s19, 0
        %s184 = scalar_select %p183, %s19, 0
        %s185 = smul.addr %s184, 5
        %s186 = smul.addr %s182, 5
        %s187 = sadd.s32 %s185, %s186
        %s188 = smul.addr %s187, 4
        %s189 = scalar_lea.vmem %s0, %s188
      $region24: #{upsample_conv_layer.2} parent=19 // pred_fallthru
        _
    $region20: #{upsample_conv_layer.2} parent=5 // pred_fallthru
      _
    %p190 = scmp.le.s32.totalorder 1, %s11
    %p191 = scmp.lt.s32.totalorder %s11, 3
    %p192 = pnand %p190, %p191
    %p193 = pneg %p192
    // Predicated region
    $region25: #{upsample_conv_layer.2} parent=5 // pred_check
      _
    $region26: #{upsample_conv_layer.2} parent=5 // pred_check_branch
      %195 = sbr.rel (%p192) target = $region28
    $region27: #{upsample_conv_layer.2} parent=5 // pred_region
      %s196 = ssub.s32 %s11, 1
      %p197 = scmp.lt.s32.totalorder %s20, 1
      %s198 = scalar_select %p197, %s20, 1
      %p199 = scmp.lt.s32.totalorder %s21, 0
      %s200 = scalar_select %p199, %s21, 0
      %s201 = smul.addr %s200, 5
      %s202 = smul.addr %s198, 5
      %s203 = sadd.s32 %s201, %s202
      %s204 = smul.addr %s203, 4
      %s205 = scalar_lea.vmem %s0, %s204
      %p206 = pneg %p51
      %p207 = pneg %p48
      %p208 = pneg %p72
      %p209 = pneg %p69
      %p210 = pneg %p100
      %p211 = pneg %p97
      %p212 = scmp.lt.s32.totalorder %s20, 1
      %s213 = scalar_select %p212, %s20, 1
      %p214 = scmp.lt.s32.totalorder %s21, 0
      %s215 = scalar_select %p214, %s21, 0
      %s216 = smul.addr %s215, 8
      %s217 = smul.addr %s213, 8
      %s218 = sadd.s32 %s216, %s217
      %s219 = smul.addr %s218, 4
      %s220 = scalar_lea.vmem %s2, %s219
      %p221 = pneg %p128
      %p222 = pneg %p125
      %p223 = scmp.lt.s32.totalorder %s20, 1
      %s224 = scalar_select %p223, %s20, 1
      %p225 = scmp.lt.s32.totalorder %s21, 0
      %s226 = scalar_select %p225, %s21, 0
      %s227 = smul.addr %s226, 2
      %s228 = smul.addr %s224, 2
      %s229 = sadd.s32 %s227, %s228
      %s230 = scalar_lea.vmem %s3, %s229
      %p231 = pneg %p156
      %p232 = pneg %p153
      %p233 = scmp.lt.s32.totalorder %s20, 1
      %s234 = scalar_select %p233, %s20, 1
      %p235 = scmp.lt.s32.totalorder %s21, 0
      %s236 = scalar_select %p235, %s21, 0
      %s237 = smul.addr %s236, 2
      %s238 = smul.addr %s234, 2
      %s239 = sadd.s32 %s237, %s238
      %s240 = scalar_lea.vmem %s4, %s239
      %p241 = scmp.lt.s32.totalorder %s20, 1
      %s242 = scalar_select %p241, %s20, 1
      %p243 = scmp.lt.s32.totalorder %s21, 0
      %s244 = scalar_select %p243, %s21, 0
      %s245 = smul.addr %s244, 5
      %s246 = smul.addr %s242, 5
      %s247 = sadd.s32 %s245, %s246
      %s248 = smul.addr %s247, 4
      %s249 = scalar_lea.vmem %s0, %s248
      %p250 = scmp.lt.s32.totalorder %s20, 1
      %s251 = scalar_select %p250, %s20, 1
      %p252 = scmp.lt.s32.totalorder %s21, 0
      %s253 = scalar_select %p252, %s21, 0
      %s254 = smul.addr %s253, 8
      %s255 = smul.addr %s251, 8
      %s256 = sadd.s32 %s254, %s255
      %s257 = smul.addr %s256, 4
      %s258 = scalar_lea.vmem %s2, %s257
      %p259 = scmp.lt.s32.totalorder %s20, 1
      %s260 = scalar_select %p259, %s20, 1
      %p261 = scmp.lt.s32.totalorder %s21, 0
      %s262 = scalar_select %p261, %s21, 0
      %s263 = smul.addr %s262, 2
      %s264 = smul.addr %s260, 2
      %s265 = sadd.s32 %s263, %s264
      %s266 = scalar_lea.vmem %s3, %s265
      %p267 = scmp.lt.s32.totalorder %s20, 1
      %s268 = scalar_select %p267, %s20, 1
      %p269 = scmp.lt.s32.totalorder %s21, 0
      %s270 = scalar_select %p269, %s21, 0
      %s271 = smul.addr %s270, 2
      %s272 = smul.addr %s268, 2
      %s273 = sadd.s32 %s271, %s272
      %s274 = scalar_lea.vmem %s4, %s273
      %v276 = vld [vmem:[%s249] sm:$0xf]
      %v277 = vld [vmem:[%s249 + $0x4] sm:$0xf]
      %v278 = vld [vmem:[%s249 + $0x8] sm:$0xf]
      %v279 = vld [vmem:[%s249 + $0xc] sm:$0xf]
      %v280 = vld [vmem:[%s1] sm:$0xff]
      %v281 = vld [vmem:[%s1 + $0x8] sm:$0xff]
      %v282 = vld [vmem:[%s1 + $0x10] sm:$0xff]
      %v283 = vld [vmem:[%s1 + $0x18] sm:$0xff]
      %v284 = vld [vmem:[%s1 + $0x20] sm:$0xff]
      %v285 = vld [vmem:[%s1 + $0x28] sm:$0xff]
      %v286 = vld [vmem:[%s1 + $0x30] sm:$0xff]
      %v287 = vld [vmem:[%s1 + $0x38] sm:$0xff]
      %v292 = vunpack.c.l.b16 %v276
      %v293 = vunpack.c.l.b16 %v277
      %v294 = vunpack.c.l.b16 %v278
      %v295 = vunpack.c.l.b16 %v279
      %v296 = vpack.c.b16 %v293, %v292
      %v297 = vpack.c.b16 %v295, %v294
      %v306 = vunpack.c.l.b16 %v280
      %v307 = vunpack.c.h.b16 %v280
      %v308 = vunpack.c.l.b16 %v281
      %v309 = vunpack.c.h.b16 %v281
      %v310 = vunpack.c.l.b16 %v282
      %v311 = vunpack.c.h.b16 %v282
      %v312 = vunpack.c.l.b16 %v283
      %v313 = vunpack.c.h.b16 %v283
      %v314 = vunpack.c.l.b16 %v284
      %v315 = vunpack.c.h.b16 %v284
      %v316 = vunpack.c.l.b16 %v285
      %v317 = vunpack.c.h.b16 %v285
      %v318 = vunpack.c.l.b16 %v286
      %v319 = vunpack.c.h.b16 %v286
      %v320 = vunpack.c.l.b16 %v287
      %v321 = vunpack.c.h.b16 %v287
      %v322 = vpack.c.b16 %v308, %v306
      %v323 = vpack.c.b16 %v309, %v307
      %v324 = vpack.c.b16 %v312, %v310
      %v325 = vpack.c.b16 %v313, %v311
      %v326 = vpack.c.b16 %v316, %v314
      %v327 = vpack.c.b16 %v317, %v315
      %v328 = vpack.c.b16 %v320, %v318
      %v329 = vpack.c.b16 %v321, %v319
      %vm338 = vcmask 523264
      %v340 = vsel %vm338, %v296, 0
      %v343 = vsel %vm338, %v297, 0
      %345 = vmatprep.subr.bf16.mxu0 %v323
      %346 = vmatpush1.bf16.msra.mxu0 %v322
      %347 = vmatprep.subr.bf16.mxu0 %v325
      %348 = vmatpush1.bf16.msra.mxu0 %v324
      %349 = vmatprep.subr.bf16.mxu0 %v327
      %350 = vmatpush1.bf16.msra.mxu0 %v326
      %351 = vmatprep.subr.bf16.mxu0 %v329
      %352 = vmatpush1.bf16.msra.mxu0 %v328
      %353 = vmatprep.subr.bf16.mxu0 0
      %354 = vmatpush1.bf16.msra.mxu0 0
      %355 = vmatprep.subr.bf16.mxu0 0
      %356 = vmatpush1.bf16.msra.mxu0 0
      %357 = vmatprep.subr.bf16.mxu0 0
      %358 = vmatpush1.bf16.msra.mxu0 0
      %359 = vmatprep.subr.bf16.mxu0 0
      %360 = vmatpush1.bf16.msra.mxu0 0
      %361 = vmatprep.subr.bf16.mxu0 0
      %362 = vmatpush1.bf16.msra.mxu0 0
      %363 = vmatprep.subr.bf16.mxu0 0
      %364 = vmatpush1.bf16.msra.mxu0 0
      %365 = vmatprep.subr.bf16.mxu0 0
      %366 = vmatpush1.bf16.msra.mxu0 0
      %367 = vmatprep.subr.bf16.mxu0 0
      %368 = vmatpush1.bf16.msra.mxu0 0
      %369 = vmatprep.subr.bf16.mxu0 0
      %370 = vmatpush1.bf16.msra.mxu0 0
      %371 = vmatprep.subr.bf16.mxu0 0
      %372 = vmatpush1.bf16.msra.mxu0 0
      %373 = vmatprep.subr.bf16.mxu0 0
      %374 = vmatpush1.bf16.msra.mxu0 0
      %375 = vmatprep.subr.bf16.mxu0 0
      %376 = vmatpush1.bf16.msra.mxu0 0
      %377 = vmatprep.mubr.bf16.mxu0 0
      %378 = vmatmul.mubr.bf16.gmra.mrb[0].mxu0 %v340
      %v379 = vpop.f32.mrb[0].mxu0
      %v380 = vadd.f32 0.0, %v379
      %v381 = vpop.f32.mrb[0].mxu0
      %v382 = vadd.f32 0.0, %v381
      %v383 = vpop.f32.mrb[0].mxu0
      %v384 = vadd.f32 0.0, %v383
      %v385 = vpop.f32.mrb[0].mxu0
      %v386 = vadd.f32 0.0, %v385
      %387 = vmatprep.mubr.bf16.mxu0 0
      %388 = vmatmul.mubr.bf16.gmra.mrb[0].mxu0 %v343
      %v389 = vpop.f32.mrb[0].mxu0
      %v390 = vadd.f32 0.0, %v389
      %v391 = vpop.f32.mrb[0].mxu0
      %v392 = vadd.f32 0.0, %v391
      %v393 = vpop.f32.mrb[0].mxu0
      %v394 = vadd.f32 0.0, %v393
      %v395 = vpop.f32.mrb[0].mxu0
      %v396 = vadd.f32 0.0, %v395
      %397 = vdwg.mxu0
      %398 = vst [vmem:[#allocation2] sm:$0xff] %v380
      %399 = vst [vmem:[#allocation2 + $0x8] sm:$0xff] %v382
      %400 = vst [vmem:[#allocation2 + $0x10] sm:$0xff] %v384
      %401 = vst [vmem:[#allocation2 + $0x18] sm:$0xff] %v386
      %402 = vst [vmem:[#allocation2 + $0x20] sm:$0xff] %v390
      %403 = vst [vmem:[#allocation2 + $0x28] sm:$0xff] %v392
      %404 = vst [vmem:[#allocation2 + $0x30] sm:$0xff] %v394
      %405 = vst [vmem:[#allocation2 + $0x38] sm:$0xff] %v396
      %v406 = vld [vmem:[%s249] sm:$0xf]
      %v407 = vld [vmem:[%s249 + $0x4] sm:$0xf]
      %v408 = vld [vmem:[%s249 + $0x8] sm:$0xf]
      %v409 = vld [vmem:[%s249 + $0xc] sm:$0xf]
      %v410 = vld [vmem:[%s249 + $0x10] sm:$0x1]
      %s411 = scalar_lea.vmem %s1, 64
      %v412 = vld [vmem:[%s411] sm:$0xff]
      %v413 = vld [vmem:[%s411 + $0x8] sm:$0xff]
      %v414 = vld [vmem:[%s411 + $0x10] sm:$0xff]
      %v415 = vld [vmem:[%s411 + $0x18] sm:$0xff]
      %v416 = vld [vmem:[%s411 + $0x20] sm:$0xff]
      %v417 = vld [vmem:[%s411 + $0x28] sm:$0xff]
      %v418 = vld [vmem:[%s411 + $0x30] sm:$0xff]
      %v419 = vld [vmem:[%s411 + $0x38] sm:$0xff]
      %v425 = vunpack.c.l.b16 %v406
      %v426 = vunpack.c.l.b16 %v407
      %v427 = vunpack.c.l.b16 %v408
      %v428 = vunpack.c.l.b16 %v409
      %v429 = vunpack.c.l.b16 %v410
      %v430 = vpack.c.b16 %v426, %v425
      %v431 = vpack.c.b16 %v428, %v427
      %v432 = vpack.c.b16 %v429, %v429
      %vm433 = vsmask.f32 7424
      %v435 = vshrl.u32 %v430, 16
      %v437 = vshll.u32 %v430, 16
      %v439 = vrot.slane %v437, 1
      %v440 = vor.u32 %v435, %v439
      %v442 = vshll.u32 %v431, 16
      %v444 = vrot.slane %v442, 1
      %v445 = vsel %vm433, %v440, %v444
      %v446 = vshrl.u32 %v431, 16
      %v448 = vor.u32 %v446, %v444
      %v450 = vshll.u32 %v432, 16
      %v452 = vrot.slane %v450, 1
      %v453 = vsel %vm433, %v448, %v452
      %v462 = vunpack.c.l.b16 %v412
      %v463 = vunpack.c.h.b16 %v412
      %v464 = vunpack.c.l.b16 %v413
      %v465 = vunpack.c.h.b16 %v413
      %v466 = vunpack.c.l.b16 %v414
      %v467 = vunpack.c.h.b16 %v414
      %v468 = vunpack.c.l.b16 %v415
      %v469 = vunpack.c.h.b16 %v415
      %v470 = vunpack.c.l.b16 %v416
      %v471 = vunpack.c.h.b16 %v416
      %v472 = vunpack.c.l.b16 %v417
      %v473 = vunpack.c.h.b16 %v417
      %v474 = vunpack.c.l.b16 %v418
      %v475 = vunpack.c.h.b16 %v418
      %v476 = vunpack.c.l.b16 %v419
      %v477 = vunpack.c.h.b16 %v419
      %v478 = vpack.c.b16 %v464, %v462
      %v479 = vpack.c.b16 %v465, %v463
      %v480 = vpack.c.b16 %v468, %v466
      %v481 = vpack.c.b16 %v469, %v467
      %v482 = vpack.c.b16 %v472, %v470
      %v483 = vpack.c.b16 %v473, %v471
      %v484 = vpack.c.b16 %v476, %v474
      %v485 = vpack.c.b16 %v477, %v475
      %v495 = vsel %vm338, %v445, 0
      %v498 = vsel %vm338, %v453, 0
      %500 = vmatprep.subr.bf16.mxu0 %v479
      %501 = vmatpush1.bf16.msra.mxu0 %v478
      %502 = vmatprep.subr.bf16.mxu0 %v481
      %503 = vmatpush1.bf16.msra.mxu0 %v480
      %504 = vmatprep.subr.bf16.mxu0 %v483
      %505 = vmatpush1.bf16.msra.mxu0 %v482
      %506 = vmatprep.subr.bf16.mxu0 %v485
      %507 = vmatpush1.bf16.msra.mxu0 %v484
      %508 = vmatprep.subr.bf16.mxu0 0
      %509 = vmatpush1.bf16.msra.mxu0 0
      %510 = vmatprep.subr.bf16.mxu0 0
      %511 = vmatpush1.bf16.msra.mxu0 0
      %512 = vmatprep.subr.bf16.mxu0 0
      %513 = vmatpush1.bf16.msra.mxu0 0
      %514 = vmatprep.subr.bf16.mxu0 0
      %515 = vmatpush1.bf16.msra.mxu0 0
      %516 = vmatprep.subr.bf16.mxu0 0
      %517 = vmatpush1.bf16.msra.mxu0 0
      %518 = vmatprep.subr.bf16.mxu0 0
      %519 = vmatpush1.bf16.msra.mxu0 0
      %520 = vmatprep.subr.bf16.mxu0 0
      %521 = vmatpush1.bf16.msra.mxu0 0
      %522 = vmatprep.subr.bf16.mxu0 0
      %523 = vmatpush1.bf16.msra.mxu0 0
      %524 = vmatprep.subr.bf16.mxu0 0
      %525 = vmatpush1.bf16.msra.mxu0 0
      %526 = vmatprep.subr.bf16.mxu0 0
      %527 = vmatpush1.bf16.msra.mxu0 0
      %528 = vmatprep.subr.bf16.mxu0 0
      %529 = vmatpush1.bf16.msra.mxu0 0
      %530 = vmatprep.subr.bf16.mxu0 0
      %531 = vmatpush1.bf16.msra.mxu0 0
      %532 = vmatprep.mubr.bf16.mxu0 0
      %533 = vmatmul.mubr.bf16.gmra.mrb[0].mxu0 %v495
      %v534 = vpop.f32.mrb[0].mxu0
      %v535 = vadd.f32 0.0, %v534
      %v536 = vpop.f32.mrb[0].mxu0
      %v537 = vadd.f32 0.0, %v536
      %v538 = vpop.f32.mrb[0].mxu0
      %v539 = vadd.f32 0.0, %v538
      %v540 = vpop.f32.mrb[0].mxu0
      %v541 = vadd.f32 0.0, %v540
      %542 = vmatprep.mubr.bf16.mxu0 0
      %543 = vmatmul.mubr.bf16.gmra.mrb[0].mxu0 %v498
      %v544 = vpop.f32.mrb[0].mxu0
      %v545 = vadd.f32 0.0, %v544
      %v546 = vpop.f32.mrb[0].mxu0
      %v547 = vadd.f32 0.0, %v546
      %v548 = vpop.f32.mrb[0].mxu0
      %v549 = vadd.f32 0.0, %v548
      %v550 = vpop.f32.mrb[0].mxu0
      %v551 = vadd.f32 0.0, %v550
      %552 = vdwg.mxu0
      %v553 = vld [vmem:[#allocation2] sm:$0xff]
      %v554 = vld [vmem:[#allocation2 + $0x8] sm:$0xff]
      %v555 = vld [vmem:[#allocation2 + $0x10] sm:$0xff]
      %v556 = vld [vmem:[#allocation2 + $0x18] sm:$0xff]
      %v557 = vld [vmem:[#allocation2 + $0x20] sm:$0xff]
      %v558 = vld [vmem:[#allocation2 + $0x28] sm:$0xff]
      %v559 = vld [vmem:[#allocation2 + $0x30] sm:$0xff]
      %v560 = vld [vmem:[#allocation2 + $0x38] sm:$0xff]
      %v561 = vadd.f32 %v553, %v535
      %v562 = vadd.f32 %v554, %v537
      %v563 = vadd.f32 %v555, %v539
      %v564 = vadd.f32 %v556, %v541
      %v565 = vadd.f32 %v557, %v545
      %v566 = vadd.f32 %v558, %v547
      %v567 = vadd.f32 %v559, %v549
      %v568 = vadd.f32 %v560, %v551
      %569 = vst [vmem:[#allocation2] sm:$0xff] %v561
      %570 = vst [vmem:[#allocation2 + $0x8] sm:$0xff] %v562
      %571 = vst [vmem:[#allocation2 + $0x10] sm:$0xff] %v563
      %572 = vst [vmem:[#allocation2 + $0x18] sm:$0xff] %v564
      %573 = vst [vmem:[#allocation2 + $0x20] sm:$0xff] %v565
      %574 = vst [vmem:[#allocation2 + $0x28] sm:$0xff] %v566
      %575 = vst [vmem:[#allocation2 + $0x30] sm:$0xff] %v567
      %576 = vst [vmem:[#allocation2 + $0x38] sm:$0xff] %v568
      %v577 = vld [vmem:[%s249] sm:$0xe]
      %v578 = vld [vmem:[%s249 + $0x4] sm:$0xf]
      %v579 = vld [vmem:[%s249 + $0x8] sm:$0xf]
      %v580 = vld [vmem:[%s249 + $0xc] sm:$0xf]
      %v581 = vld [vmem:[%s249 + $0x10] sm:$0x1]
      %s582 = scalar_lea.vmem %s1, 128
      %v583 = vld [vmem:[%s582] sm:$0xff]
      %v584 = vld [vmem:[%s582 + $0x8] sm:$0xff]
      %v585 = vld [vmem:[%s582 + $0x10] sm:$0xff]
      %v586 = vld [vmem:[%s582 + $0x18] sm:$0xff]
      %v587 = vld [vmem:[%s582 + $0x20] sm:$0xff]
      %v588 = vld [vmem:[%s582 + $0x28] sm:$0xff]
      %v589 = vld [vmem:[%s582 + $0x30] sm:$0xff]
      %v590 = vld [vmem:[%s582 + $0x38] sm:$0xff]
      %v596 = vunpack.c.l.b16 %v577
      %v597 = vunpack.c.l.b16 %v578
      %v598 = vunpack.c.l.b16 %v579
      %v599 = vunpack.c.l.b16 %v580
      %v600 = vunpack.c.l.b16 %v581
      %v601 = vpack.c.b16 %v597, %v596
      %v602 = vpack.c.b16 %v599, %v598
      %v603 = vpack.c.b16 %v600, %v600
      %vm604 = vcmask 1046528
      %v605 = vrot.slane %v601, 1
      %v606 = vrot.slane %v602, 1
      %v607 = vsel %vm604, %v605, %v606
      %v608 = vrot.slane %v603, 1
      %v609 = vsel %vm604, %v606, %v608
      %v618 = vunpack.c.l.b16 %v583
      %v619 = vunpack.c.h.b16 %v583
      %v620 = vunpack.c.l.b16 %v584
      %v621 = vunpack.c.h.b16 %v584
      %v622 = vunpack.c.l.b16 %v585
      %v623 = vunpack.c.h.b16 %v585
      %v624 = vunpack.c.l.b16 %v586
      %v625 = vunpack.c.h.b16 %v586
      %v626 = vunpack.c.l.b16 %v587
      %v627 = vunpack.c.h.b16 %v587
      %v628 = vunpack.c.l.b16 %v588
      %v629 = vunpack.c.h.b16 %v588
      %v630 = vunpack.c.l.b16 %v589
      %v631 = vunpack.c.h.b16 %v589
      %v632 = vunpack.c.l.b16 %v590
      %v633 = vunpack.c.h.b16 %v590
      %v634 = vpack.c.b16 %v620, %v618
      %v635 = vpack.c.b16 %v621, %v619
      %v636 = vpack.c.b16 %v624, %v622
      %v637 = vpack.c.b16 %v625, %v623
      %v638 = vpack.c.b16 %v628, %v626
      %v639 = vpack.c.b16 %v629, %v627
      %v640 = vpack.c.b16 %v632, %v630
      %v641 = vpack.c.b16 %v633, %v631
      %v651 = vsel %vm338, %v607, 0
      %v654 = vsel %vm338, %v609, 0
      %656 = vmatprep.subr.bf16.mxu0 %v635
      %657 = vmatpush1.bf16.msra.mxu0 %v634
      %658 = vmatprep.subr.bf16.mxu0 %v637
      %659 = vmatpush1.bf16.msra.mxu0 %v636
      %660 = vmatprep.subr.bf16.mxu0 %v639
      %661 = vmatpush1.bf16.msra.mxu0 %v638
      %662 = vmatprep.subr.bf16.mxu0 %v641
      %663 = vmatpush1.bf16.msra.mxu0 %v640
      %664 = vmatprep.subr.bf16.mxu0 0
      %665 = vmatpush1.bf16.msra.mxu0 0
      %666 = vmatprep.subr.bf16.mxu0 0
      %667 = vmatpush1.bf16.msra.mxu0 0
      %668 = vmatprep.subr.bf16.mxu0 0
      %669 = vmatpush1.bf16.msra.mxu0 0
      %670 = vmatprep.subr.bf16.mxu0 0
      %671 = vmatpush1.bf16.msra.mxu0 0
      %672 = vmatprep.subr.bf16.mxu0 0
      %673 = vmatpush1.bf16.msra.mxu0 0
      %674 = vmatprep.subr.bf16.mxu0 0
      %675 = vmatpush1.bf16.msra.mxu0 0
      %676 = vmatprep.subr.bf16.mxu0 0
      %677 = vmatpush1.bf16.msra.mxu0 0
      %678 = vmatprep.subr.bf16.mxu0 0
      %679 = vmatpush1.bf16.msra.mxu0 0
      %680 = vmatprep.subr.bf16.mxu0 0
      %681 = vmatpush1.bf16.msra.mxu0 0
      %682 = vmatprep.subr.bf16.mxu0 0
      %683 = vmatpush1.bf16.msra.mxu0 0
      %684 = vmatprep.subr.bf16.mxu0 0
      %685 = vmatpush1.bf16.msra.mxu0 0
      %686 = vmatprep.subr.bf16.mxu0 0
      %687 = vmatpush1.bf16.msra.mxu0 0
      %688 = vmatprep.mubr.bf16.mxu0 0
      %689 = vmatmul.mubr.bf16.gmra.mrb[0].mxu0 %v651
      %v690 = vpop.f32.mrb[0].mxu0
      %v691 = vadd.f32 0.0, %v690
      %v692 = vpop.f32.mrb[0].mxu0
      %v693 = vadd.f32 0.0, %v692
      %v694 = vpop.f32.mrb[0].mxu0
      %v695 = vadd.f32 0.0, %v694
      %v696 = vpop.f32.mrb[0].mxu0
      %v697 = vadd.f32 0.0, %v696
      %698 = vmatprep.mubr.bf16.mxu0 0
      %699 = vmatmul.mubr.bf16.gmra.mrb[0].mxu0 %v654
      %v700 = vpop.f32.mrb[0].mxu0
      %v701 = vadd.f32 0.0, %v700
      %v702 = vpop.f32.mrb[0].mxu0
      %v703 = vadd.f32 0.0, %v702
      %v704 = vpop.f32.mrb[0].mxu0
      %v705 = vadd.f32 0.0, %v704
      %v706 = vpop.f32.mrb[0].mxu0
      %v707 = vadd.f32 0.0, %v706
      %708 = vdwg.mxu0
      %v709 = vld [vmem:[#allocation2] sm:$0xff]
      %v710 = vld [vmem:[#allocation2 + $0x8] sm:$0xff]
      %v711 = vld [vmem:[#allocation2 + $0x10] sm:$0xff]
      %v712 = vld [vmem:[#allocation2 + $0x18] sm:$0xff]
      %v713 = vld [vmem:[#allocation2 + $0x20] sm:$0xff]
      %v714 = vld [vmem:[#allocation2 + $0x28] sm:$0xff]
      %v715 = vld [vmem:[#allocation2 + $0x30] sm:$0xff]
      %v716 = vld [vmem:[#allocation2 + $0x38] sm:$0xff]
      %v717 = vadd.f32 %v709, %v691
      %v718 = vadd.f32 %v710, %v693
      %v719 = vadd.f32 %v711, %v695
      %v720 = vadd.f32 %v712, %v697
      %v721 = vadd.f32 %v713, %v701
      %v722 = vadd.f32 %v714, %v703
      %v723 = vadd.f32 %v715, %v705
      %v724 = vadd.f32 %v716, %v707
      %725 = vst [vmem:[#allocation2] sm:$0xff] %v717
      %726 = vst [vmem:[#allocation2 + $0x8] sm:$0xff] %v718
      %727 = vst [vmem:[#allocation2 + $0x10] sm:$0xff] %v719
      %728 = vst [vmem:[#allocation2 + $0x18] sm:$0xff] %v720
      %729 = vst [vmem:[#allocation2 + $0x20] sm:$0xff] %v721
      %730 = vst [vmem:[#allocation2 + $0x28] sm:$0xff] %v722
      %731 = vst [vmem:[#allocation2 + $0x30] sm:$0xff] %v723
      %732 = vst [vmem:[#allocation2 + $0x38] sm:$0xff] %v724
      %v733 = vld [vmem:[#allocation2] sm:$0xff]
      %v734 = vld [vmem:[#allocation2 + $0x8] sm:$0xff]
      %v735 = vld [vmem:[#allocation2 + $0x10] sm:$0xff]
      %v736 = vld [vmem:[#allocation2 + $0x18] sm:$0xff]
      %v737 = vld [vmem:[#allocation2 + $0x20] sm:$0xff]
      %v738 = vld [vmem:[#allocation2 + $0x28] sm:$0xff]
      %v739 = vld [vmem:[#allocation2 + $0x30] sm:$0xff]
      %v740 = vld [vmem:[#allocation2 + $0x38] sm:$0xff]
      %v741 = vpack.c.bf16 %v735, %v733
      %v742 = vpack.c.bf16 %v736, %v734
      %v743 = vpack.c.bf16 %v739, %v737
      %v744 = vpack.c.bf16 %v740, %v738
      %v749 = vunpack.c.l.b16 %v741
      %v750 = vunpack.c.l.b16 %v742
      %v751 = vunpack.c.h.b16 %v741
      %v752 = vunpack.c.h.b16 %v742
      %v753 = vunpack.c.l.b16 %v743
      %v754 = vunpack.c.l.b16 %v744
      %v755 = vunpack.c.h.b16 %v743
      %v756 = vunpack.c.h.b16 %v744
      %v757 = vpack.c.b16 %v750, %v749
      %v758 = vpack.c.b16 %v752, %v751
      %v759 = vpack.c.b16 %v754, %v753
      %v760 = vpack.c.b16 %v756, %v755
      %765 = vst [vmem:[%s258] sm:$0xff] %v757
      %766 = vst [vmem:[%s258 + $0x8] sm:$0xff] %v758
      %767 = vst [vmem:[%s258 + $0x10] sm:$0xff] %v759
      %768 = vst [vmem:[%s258 + $0x18] sm:$0xff] %v760
      %v769 = vadd.f32 %v733, %v735
      %v770 = vadd.f32 %v769, %v737
      %v771 = vadd.f32 %v770, %v739
      %v772 = vrot.slane %v771, 4
      %v773 = vadd.f32 %v771, %v772
      %v774 = vrot.slane %v773, 2
      %v775 = vadd.f32 %v773, %v774
      %v776 = vrot.slane %v775, 1
      %v777 = vadd.f32 %v775, %v776
      %v778 = vadd.f32 %v734, %v736
      %v779 = vadd.f32 %v778, %v738
      %v780 = vadd.f32 %v779, %v740
      %v781 = vrot.slane %v780, 4
      %v782 = vadd.f32 %v780, %v781
      %v783 = vrot.slane %v782, 2
      %v784 = vadd.f32 %v782, %v783
      %v785 = vrot.slane %v784, 1
      %v786 = vadd.f32 %v784, %v785
      %v787 = vmul.f32 %v777, 0.03125
      %v788 = vmul.f32 %v786, 0.03125
      %v789 = vsub.f32 %v733, %v787
      %v790 = vsub.f32 %v734, %v788
      %v791 = vsub.f32 %v735, %v787
      %v792 = vsub.f32 %v736, %v788
      %v793 = vsub.f32 %v737, %v787
      %v794 = vsub.f32 %v738, %v788
      %v795 = vsub.f32 %v739, %v787
      %v796 = vsub.f32 %v740, %v788
      %v799 = vcombine.low %v777, %v786
      %v801 = vunpack.c.l.s4 1966171168
      %v802 = vunpack.c.0.s8 %v801
      %v803 = vlaneseq
      %v804 = vshrl.u32 %v803, 7
      %v805 = vsub.s32 %v802, %v804
      %v806 = vrot.slane %v799, %v805
      %v808 = vunpack.c.l.s4 1966171168
      %v809 = vunpack.c.0.s8 %v808
      %v810 = vlaneseq
      %v811 = vshrl.u32 %v810, 7
      %v812 = vsub.s32 %v809, %v811
      %v813 = vrot.slane %v806, %v812
      %v815 = vlaneseq
      %vm816 = vcmp.ge.s32.totalorder %v815, 0
      %vm817 = vcmp.lt.s32.totalorder %v815, 256
      %vm818 = vmand %vm816, %vm817
      %819 = vst.msk [vmem:[%s266] sm:$0x3] %vm818, %v813
      %v820 = vmul.f32 %v789, %v789
      %v821 = vmul.f32 %v790, %v790
      %v822 = vmul.f32 %v791, %v791
      %v823 = vmul.f32 %v792, %v792
      %v824 = vmul.f32 %v793, %v793
      %v825 = vmul.f32 %v794, %v794
      %v826 = vmul.f32 %v795, %v795
      %v827 = vmul.f32 %v796, %v796
      %v828 = vadd.f32 %v820, %v822
      %v829 = vadd.f32 %v828, %v824
      %v830 = vadd.f32 %v829, %v826
      %v831 = vrot.slane %v830, 4
      %v832 = vadd.f32 %v830, %v831
      %v833 = vrot.slane %v832, 2
      %v834 = vadd.f32 %v832, %v833
      %v835 = vrot.slane %v834, 1
      %v836 = vadd.f32 %v834, %v835
      %v837 = vadd.f32 %v821, %v823
      %v838 = vadd.f32 %v837, %v825
      %v839 = vadd.f32 %v838, %v827
      %v840 = vrot.slane %v839, 4
      %v841 = vadd.f32 %v839, %v840
      %v842 = vrot.slane %v841, 2
      %v843 = vadd.f32 %v841, %v842
      %v844 = vrot.slane %v843, 1
      %v845 = vadd.f32 %v843, %v844
      %v848 = vcombine.low %v836, %v845
      %v850 = vunpack.c.l.s4 1966171168
      %v851 = vunpack.c.0.s8 %v850
      %v852 = vlaneseq
      %v853 = vshrl.u32 %v852, 7
      %v854 = vsub.s32 %v851, %v853
      %v855 = vrot.slane %v848, %v854
      %v857 = vunpack.c.l.s4 1966171168
      %v858 = vunpack.c.0.s8 %v857
      %v859 = vlaneseq
      %v860 = vshrl.u32 %v859, 7
      %v861 = vsub.s32 %v858, %v860
      %v862 = vrot.slane %v855, %v861
      %864 = vst.msk [vmem:[%s274] sm:$0x3] %vm818, %v862
      %p865 = scmp.lt.s32.totalorder %s20, 1
      %s866 = scalar_select %p865, %s20, 1
      %p867 = scmp.lt.s32.totalorder %s21, 0
      %s868 = scalar_select %p867, %s21, 0
      %s869 = smul.addr %s868, 8
      %s870 = smul.addr %s866, 8
      %s871 = sadd.s32 %s869, %s870
      %s872 = smul.addr %s871, 4
      %s873 = scalar_lea.vmem %s2, %s872
      %p874 = scmp.lt.s32.totalorder %s20, 1
      %s875 = scalar_select %p874, %s20, 1
      %p876 = scmp.lt.s32.totalorder %s21, 0
      %s877 = scalar_select %p876, %s21, 0
      %s878 = smul.addr %s877, 2
      %s879 = smul.addr %s875, 2
      %s880 = sadd.s32 %s878, %s879
      %s881 = scalar_lea.vmem %s3, %s880
      %p882 = scmp.lt.s32.totalorder %s20, 1
      %s883 = scalar_select %p882, %s20, 1
      %p884 = scmp.lt.s32.totalorder %s21, 0
      %s885 = scalar_select %p884, %s21, 0
      %s886 = smul.addr %s885, 2
      %s887 = smul.addr %s883, 2
      %s888 = sadd.s32 %s886, %s887
      %s889 = scalar_lea.vmem %s4, %s888
      // Predicated region
      $region29: #{upsample_conv_layer.2} parent=27 // pred_check
        %p890 = pneg %p97
      $region30: #{upsample_conv_layer.2} parent=27 // pred_check_branch
        %892 = sbr.rel (%p890) target = $region32
      $region31: #{upsample_conv_layer.2} parent=27 // pred_region
        _
      $region32: #{upsample_conv_layer.2} parent=27 // pred_fallthru
        _
      // Predicated region
      $region33: #{upsample_conv_layer.2} parent=27 // pred_check
        %p893 = pneg %p125
      $region34: #{upsample_conv_layer.2} parent=27 // pred_check_branch
        %895 = sbr.rel (%p893) target = $region36
      $region35: #{upsample_conv_layer.2} parent=27 // pred_region
        _
      $region36: #{upsample_conv_layer.2} parent=27 // pred_fallthru
        _
      // Predicated region
      $region37: #{upsample_conv_layer.2} parent=27 // pred_check
        %p896 = pneg %p153
      $region38: #{upsample_conv_layer.2} parent=27 // pred_check_branch
        %898 = sbr.rel (%p896) target = $region40
      $region39: #{upsample_conv_layer.2} parent=27 // pred_region
        _
      $region40: #{upsample_conv_layer.2} parent=27 // pred_fallthru
        _
    $region28: #{upsample_conv_layer.2} parent=5 // pred_fallthru
      _
    %p899 = scmp.le.s32.totalorder 2, %s11
    // Predicated region
    $region41: #{upsample_conv_layer.2} parent=5 // pred_check
      %p900 = pneg %p899
    $region42: #{upsample_conv_layer.2} parent=5 // pred_check_branch
      %902 = sbr.rel (%p900) target = $region44
    $region43: #{upsample_conv_layer.2} parent=5 // pred_region
      %s903 = ssub.s32 %s11, 2
      // Predicated region
      $region45: #{upsample_conv_layer.2} parent=43 // pred_check
        %p904 = pneg %p103
      $region46: #{upsample_conv_layer.2} parent=43 // pred_check_branch
        %906 = sbr.rel (%p904) target = $region48
      $region47: #{upsample_conv_layer.2} parent=43 // pred_region
        %p907 = scmp.lt.s32.totalorder %s22, 1
        %s908 = scalar_select %p907, %s22, 1
        %p909 = scmp.lt.s32.totalorder %s23, 0
        %s910 = scalar_select %p909, %s23, 0
        %s911 = smul.addr %s910, 8
        %s912 = smul.addr %s908, 8
        %s913 = sadd.s32 %s911, %s912
        %s914 = smul.addr %s913, 4
        %s915 = scalar_lea.vmem %s2, %s914
      $region48: #{upsample_conv_layer.2} parent=43 // pred_fallthru
        _
      // Predicated region
      $region49: #{upsample_conv_layer.2} parent=43 // pred_check
        %p916 = pneg %p131
      $region50: #{upsample_conv_layer.2} parent=43 // pred_check_branch
        %918 = sbr.rel (%p916) target = $region52
      $region51: #{upsample_conv_layer.2} parent=43 // pred_region
        %p919 = scmp.lt.s32.totalorder %s22, 1
        %s920 = scalar_select %p919, %s22, 1
        %p921 = scmp.lt.s32.totalorder %s23, 0
        %s922 = scalar_select %p921, %s23, 0
        %s923 = smul.addr %s922, 2
        %s924 = smul.addr %s920, 2
        %s925 = sadd.s32 %s923, %s924
        %s926 = scalar_lea.vmem %s3, %s925
      $region52: #{upsample_conv_layer.2} parent=43 // pred_fallthru
        _
      // Predicated region
      $region53: #{upsample_conv_layer.2} parent=43 // pred_check
        %p927 = pneg %p159
      $region54: #{upsample_conv_layer.2} parent=43 // pred_check_branch
        %929 = sbr.rel (%p927) target = $region56
      $region55: #{upsample_conv_layer.2} parent=43 // pred_region
        %p930 = scmp.lt.s32.totalorder %s22, 1
        %s931 = scalar_select %p930, %s22, 1
        %p932 = scmp.lt.s32.totalorder %s23, 0
        %s933 = scalar_select %p932, %s23, 0
        %s934 = smul.addr %s933, 2
        %s935 = smul.addr %s931, 2
        %s936 = sadd.s32 %s934, %s935
        %s937 = scalar_lea.vmem %s4, %s936
      $region56: #{upsample_conv_layer.2} parent=43 // pred_fallthru
        _
    $region44: #{upsample_conv_layer.2} parent=5 // pred_fallthru
      _
  $region6: #{upsample_conv_layer.2} parent=0 // loop_footer
    %s15 = sadd.s32 1, %s11
  $region7: #{upsample_conv_layer.2} parent=0 // loop_footer_branch
    %10 = sbr.rel target = $region3
  $region8: #{upsample_conv_layer.2} parent=0 // loop_exit
    _

// kernel: upsample_conv_layer.3
$region0: #{upsample_conv_layer.3}
  #allocation0 [shape = 'u32[]', space=smem, size = 0x4, offset = 0x4, fixed_abs, tag = 'smem constant byte address 0x4 - core index']
  #allocation1 [shape = 'u32[144,128]{1,0:T(1,128)}', space=vmem, size = 0x12000, scoped, tag = 'internal scratch']
  %s0 = inlined_call_operand.vmem [shape: bf16[64,256], index: 0, kind: input, shape index: {}]
  %s1 = inlined_call_operand.vmem [shape: f32[1,256], index: 1, kind: input, shape index: {}]
  %s2 = inlined_call_operand.vmem [shape: f32[1,256], index: 2, kind: input, shape index: {}]
  %s3 = inlined_call_operand.vmem [shape: f32[64,256], index: 3, kind: output, shape index: {}]
  %s4 = sld [smem:[#allocation0]]
  $region22: #{upsample_conv_layer.3} parent=0
    _
  %s6 = ssub.s32 1, %s4
  %s7 = scalar_select 0, %s6, %s4
  // Predicated region
  $region2: #{upsample_conv_layer.3} parent=0 // pred_check
    _
  $region3: #{upsample_conv_layer.3} parent=0 // pred_check_branch
    %9 = sbr.rel (0) target = $region5
  $region4: #{upsample_conv_layer.3} parent=0 // pred_region
    _
  $region5: #{upsample_conv_layer.3} parent=0 // pred_fallthru
    _
  // Predicated region
  $region6: #{upsample_conv_layer.3} parent=0 // pred_check
    _
  $region7: #{upsample_conv_layer.3} parent=0 // pred_check_branch
    %11 = sbr.rel (0) target = $region9
  $region8: #{upsample_conv_layer.3} parent=0 // pred_region
    _
  $region9: #{upsample_conv_layer.3} parent=0 // pred_fallthru
    _
  // Predicated region
  $region10: #{upsample_conv_layer.3} parent=0 // pred_check
    _
  $region11: #{upsample_conv_layer.3} parent=0 // pred_check_branch
    %13 = sbr.rel (0) target = $region13
  $region12: #{upsample_conv_layer.3} parent=0 // pred_region
    _
  $region13: #{upsample_conv_layer.3} parent=0 // pred_fallthru
    _
  %v14 = vld [vmem:[%s0] sm:$0xff]
  %v15 = vld [vmem:[%s0 + $0x8] sm:$0xff]
  %v16 = vld [vmem:[%s0 + $0x10] sm:$0xff]
  %v17 = vld [vmem:[%s0 + $0x18] sm:$0xff]
  %v18 = vld [vmem:[%s0 + $0x20] sm:$0xff]
  %v19 = vld [vmem:[%s0 + $0x28] sm:$0xff]
  %v20 = vld [vmem:[%s0 + $0x30] sm:$0xff]
  %v21 = vld [vmem:[%s0 + $0x38] sm:$0xff]
  %v22 = vunpack.c.l.bf16 %v14
  %v23 = vunpack.c.h.bf16 %v14
  %v24 = vunpack.c.l.bf16 %v15
  %v25 = vunpack.c.h.bf16 %v15
  %v26 = vunpack.c.l.bf16 %v16
  %v27 = vunpack.c.h.bf16 %v16
  %v28 = vunpack.c.l.bf16 %v17
  %v29 = vunpack.c.h.bf16 %v17
  %v30 = vunpack.c.l.bf16 %v18
  %v31 = vunpack.c.h.bf16 %v18
  %v32 = vunpack.c.l.bf16 %v19
  %v33 = vunpack.c.h.bf16 %v19
  %v34 = vunpack.c.l.bf16 %v20
  %v35 = vunpack.c.h.bf16 %v20
  %v36 = vunpack.c.l.bf16 %v21
  %v37 = vunpack.c.h.bf16 %v21
  %v38 = vld [vmem:[%s1] sm:$0x3]
  %v40 = vlaneseq
  %v41 = vshrl.u32 %v40, 7
  %v42 = vsub.s32 0, %v41
  %v43 = vrot.slane %v38, %v42
  %v44 = vlaneseq
  %v45 = vshrl.u32 %v44, 7
  %v46 = vsub.s32 1, %v45
  %v47 = vrot.slane %v38, %v46
  %v50 = vmul.f32 %v22, %v43
  %v51 = vmul.f32 %v23, %v47
  %v52 = vmul.f32 %v24, %v43
  %v53 = vmul.f32 %v25, %v47
  %v54 = vmul.f32 %v26, %v43
  %v55 = vmul.f32 %v27, %v47
  %v56 = vmul.f32 %v28, %v43
  %v57 = vmul.f32 %v29, %v47
  %v58 = vmul.f32 %v30, %v43
  %v59 = vmul.f32 %v31, %v47
  %v60 = vmul.f32 %v32, %v43
  %v61 = vmul.f32 %v33, %v47
  %v62 = vmul.f32 %v34, %v43
  %v63 = vmul.f32 %v35, %v47
  %v64 = vmul.f32 %v36, %v43
  %v65 = vmul.f32 %v37, %v47
  %v66 = vld [vmem:[%s2] sm:$0x3]
  %v68 = vlaneseq
  %v69 = vshrl.u32 %v68, 7
  %v70 = vsub.s32 0, %v69
  %v71 = vrot.slane %v66, %v70
  %v72 = vlaneseq
  %v73 = vshrl.u32 %v72, 7
  %v74 = vsub.s32 1, %v73
  %v75 = vrot.slane %v66, %v74
  %v78 = vadd.f32 %v50, %v71
  %v79 = vadd.f32 %v51, %v75
  %v80 = vadd.f32 %v52, %v71
  %v81 = vadd.f32 %v53, %v75
  %v82 = vadd.f32 %v54, %v71
  %v83 = vadd.f32 %v55, %v75
  %v84 = vadd.f32 %v56, %v71
  %v85 = vadd.f32 %v57, %v75
  %v86 = vadd.f32 %v58, %v71
  %v87 = vadd.f32 %v59, %v75
  %v88 = vadd.f32 %v60, %v71
  %v89 = vadd.f32 %v61, %v75
  %v90 = vadd.f32 %v62, %v71
  %v91 = vadd.f32 %v63, %v75
  %v92 = vadd.f32 %v64, %v71
  %v93 = vadd.f32 %v65, %v75
  %v94 = vmax.f32 %v78, 0.0
  %v95 = vmax.f32 %v79, 0.0
  %v96 = vmax.f32 %v80, 0.0
  %v97 = vmax.f32 %v81, 0.0
  %v98 = vmax.f32 %v82, 0.0
  %v99 = vmax.f32 %v83, 0.0
  %v100 = vmax.f32 %v84, 0.0
  %v101 = vmax.f32 %v85, 0.0
  %v102 = vmax.f32 %v86, 0.0
  %v103 = vmax.f32 %v87, 0.0
  %v104 = vmax.f32 %v88, 0.0
  %v105 = vmax.f32 %v89, 0.0
  %v106 = vmax.f32 %v90, 0.0
  %v107 = vmax.f32 %v91, 0.0
  %v108 = vmax.f32 %v92, 0.0
  %v109 = vmax.f32 %v93, 0.0
  %110 = vst [vmem:[%s3] sm:$0xff] %v94
  %111 = vst [vmem:[%s3 + $0x8] sm:$0xff] %v95
  %112 = vst [vmem:[%s3 + $0x10] sm:$0xff] %v96
  %113 = vst [vmem:[%s3 + $0x18] sm:$0xff] %v97
  %114 = vst [vmem:[%s3 + $0x20] sm:$0xff] %v98
  %115 = vst [vmem:[%s3 + $0x28] sm:$0xff] %v99
  %116 = vst [vmem:[%s3 + $0x30] sm:$0xff] %v100
  %117 = vst [vmem:[%s3 + $0x38] sm:$0xff] %v101
  %118 = vst [vmem:[%s3 + $0x40] sm:$0xff] %v102
  %119 = vst [vmem:[%s3 + $0x48] sm:$0xff] %v103
  %120 = vst [vmem:[%s3 + $0x50] sm:$0xff] %v104
  %121 = vst [vmem:[%s3 + $0x58] sm:$0xff] %v105
  %122 = vst [vmem:[%s3 + $0x60] sm:$0xff] %v106
  %123 = vst [vmem:[%s3 + $0x68] sm:$0xff] %v107
  %124 = vst [vmem:[%s3 + $0x70] sm:$0xff] %v108
  %125 = vst [vmem:[%s3 + $0x78] sm:$0xff] %v109
  // Predicated region
  $region14: #{upsample_conv_layer.3} parent=0 // pred_check
    _
  $region15: #{upsample_conv_layer.3} parent=0 // pred_check_branch
    %127 = sbr.rel (0) target = $region17
  $region16: #{upsample_conv_layer.3} parent=0 // pred_region
    _
  $region17: #{upsample_conv_layer.3} parent=0 // pred_fallthru
    _
  // Predicated region
  $region18: #{upsample_conv_layer.3} parent=0 // pred_check
    _
  $region19: #{upsample_conv_layer.3} parent=0 // pred_check_branch
    %129 = sbr.rel (0) target = $region21
  $region20: #{upsample_conv_layer.3} parent=0 // pred_region
    _
  $region21: #{upsample_conv_layer.3} parent=0 // pred_fallthru
    _

</llo_original>
